<compile_context>
chip_gen: v5e
topology: v5e:2x2
jax: 0.10.0
libtpu: 0.0.40
codegen_flags: <defaults>
</compile_context>

<pallas_src>
import jax
import jax.numpy as jnp
import numpy as np
from jax import lax
from jax.experimental import pallas as pl
from jax.experimental.pallas import tpu as pltpu


def _attention_kernel(hid_ref, enc_ref, wh_ref, we_ref, bias_ref, v_ref,
                      lens_ref, out_ref):
    # hid_ref : (1, B, H)   last decoder layer (selected by the BlockSpec index_map)
    # enc_ref : (B*S, H)    encoder outputs, batch-major rows (row = b*S + s)
    # wh_ref  : (H, A)      attn-weight columns hitting the decoder hidden
    # we_ref  : (H, A)      attn-weight columns hitting the encoder outputs
    # bias_ref: (1, A)      attn bias
    # v_ref   : (1, A)      v_fc weight (no bias)
    # lens_ref: (B, 1)      int32 valid lengths
    # out_ref : (B, S)      softmax attention weights
    B, S = out_ref.shape
    A = wh_ref.shape[1]

    # Batched hidden projection: one (B,H)@(H,A) MXU matmul for the whole batch.
    hid = hid_ref[0]                                                        # (B, H)
    proj_h = jnp.dot(hid, wh_ref[...],
                     preferred_element_type=jnp.float32)                   # (B, A)

    # Batched encoder projection: one (B*S,H)@(H,A) MXU matmul for all rows.
    proj_e = jnp.dot(enc_ref[...], we_ref[...],
                     preferred_element_type=jnp.float32)                   # (B*S, A)
    # S == 8 -> each batch's rows occupy exactly one sublane tile; this leading-dim
    # split is layout-free.
    proj_e = proj_e.reshape(B, S, A)                                        # (B, S, A)

    # energy = tanh(cat(hid_rep, enc) @ W.T + b)  ==  tanh(hid@Wh + enc@We + b)
    energy = jnp.tanh(proj_e + proj_h[:, None, :] + bias_ref[...])          # (B, S, A)

    # v-projection on the VPU + lane reduction (keeps the MXU free of an M=1 matmul).
    att = jnp.sum(energy * v_ref[...], axis=-1)                             # (B, S)

    # Mask padded positions (matches attention[mask] = -1e9).
    idx = lax.broadcasted_iota(jnp.int32, (B, S), 1)
    att = jnp.where(idx >= lens_ref[...], jnp.float32(-1.0e9), att)

    # Softmax over the sequence dim with an exact divide (proper distribution).
    m = jnp.max(att, axis=1, keepdims=True)
    e = jnp.exp(att - m)
    out_ref[...] = e / jnp.sum(e, axis=1, keepdims=True)                     # (B, S)


def prepare_params(attn_w, attn_b, v_w, hidden_dim, param_dtype=jnp.float32):
    """One-time layout prep, hoisted out of the per-call hot path.

    attn_w: (A, 2H) weight of nn.Linear(2H, A); attn_b: (A,); v_w: (1, A).
    The concat weight is split column-wise and pre-transposed for right-multiplication;
    params are stored in the compute dtype so no per-call casts are needed.
    """
    H = hidden_dim
    A = attn_w.shape[0]
    wh = jnp.asarray(attn_w[:, :H].T, param_dtype)      # (H, A): hits decoder hidden
    we = jnp.asarray(attn_w[:, H:].T, param_dtype)      # (H, A): hits encoder outputs
    bias = jnp.asarray(attn_b, param_dtype).reshape(1, A)
    v = jnp.asarray(v_w, param_dtype).reshape(1, A)
    return wh, we, bias, v


@jax.jit
def attention_forward(hidden, encoder_outputs, lengths, wh, we, bias, v):
    """hidden: (L,B,H), encoder_outputs: (S,B,H), lengths: (B,) -> (B,S) softmax weights."""
    L, B, H = hidden.shape
    S = encoder_outputs.shape[0]
    A = wh.shape[1]

    # Batch-major 2D encoder view. This touches ~S*B*H*4 bytes (a couple of KB here)
    # and is fused under jit; the kernel then consumes one clean (B*S, H) VMEM slab.
    enc2d = jnp.transpose(encoder_outputs, (1, 0, 2)).reshape(B * S, H)
    lens2d = lengths.astype(jnp.int32).reshape(B, 1)

    return pl.pallas_call(
        _attention_kernel,
        grid=(1,),
        in_specs=[
            # Last decoder layer selected in the index_map -> only 1/L of hidden is DMA'd.
            pl.BlockSpec((1, B, H), lambda i: (L - 1, 0, 0),
                         memory_space=pltpu.MemorySpace.VMEM),
            pl.BlockSpec((B * S, H), lambda i: (0, 0),
                         memory_space=pltpu.MemorySpace.VMEM),
            pl.BlockSpec((H, A), lambda i: (0, 0), memory_space=pltpu.MemorySpace.VMEM),
            pl.BlockSpec((H, A), lambda i: (0, 0), memory_space=pltpu.MemorySpace.VMEM),
            pl.BlockSpec((1, A), lambda i: (0, 0), memory_space=pltpu.MemorySpace.VMEM),
            pl.BlockSpec((1, A), lambda i: (0, 0), memory_space=pltpu.MemorySpace.VMEM),
            pl.BlockSpec((B, 1), lambda i: (0, 0), memory_space=pltpu.MemorySpace.VMEM),
        ],
        out_specs=pl.BlockSpec((B, S), lambda i: (0, 0),
                               memory_space=pltpu.MemorySpace.VMEM),
        out_shape=jax.ShapeDtypeStruct((B, S), jnp.float32),
        compiler_params=pltpu.CompilerParams(dimension_semantics=("arbitrary",)),
    )(hidden, enc2d, wh, we, bias, v, lens2d)


def reference(hidden, encoder_outputs, lengths, attn_w, attn_b, v_w):
    """Pure-JAX transliteration of the PyTorch forward (for verification)."""
    hid = hidden[-1]                                                        # (B, H)
    S = encoder_outputs.shape[0]
    B = hid.shape[0]
    hid_rep = jnp.broadcast_to(hid[:, None, :], (B, S, hid.shape[1]))
    enc = jnp.transpose(encoder_outputs, (1, 0, 2))                         # (B, S, H)
    cat = jnp.concatenate([hid_rep, enc], axis=2)                           # (B, S, 2H)
    energy = jnp.tanh(cat @ attn_w.T + attn_b)                              # (B, S, A)
    att = (energy @ v_w.T)[..., 0]                                          # (B, S)
    mask = jnp.arange(S)[None, :] >= lengths[:, None]
    att = jnp.where(mask, jnp.float32(-1.0e9), att)
    return jax.nn.softmax(att, axis=1)


if __name__ == "__main__":
    # Shapes consistent with the module: hidden_dim=32, attention_dim=64, num_layers=2,
    # batch=2, src_len=8, bidirectional_encoder=False (input_dim = 2*H).
    L, B, S, H, A = 2, 2, 8, 32, 64

    key = jax.random.PRNGKey(0)
    k1, k2, k3, k4, k5 = jax.random.split(key, 5)
    hidden = jax.random.normal(k1, (L, B, H), jnp.float32)
    encoder_outputs = jax.random.normal(k2, (S, B, H), jnp.float32)
    lengths = jnp.array([5, 8], dtype=jnp.int32)

    # Synthetic parameters with nn.Linear(2H, A) / nn.Linear(A, 1, bias=False) shapes.
    attn_w = 0.1 * jax.random.normal(k3, (A, 2 * H), jnp.float32)
    attn_b = 0.1 * jax.random.normal(k4, (A,), jnp.float32)
    v_w = 0.1 * jax.random.normal(k5, (1, A), jnp.float32)

    # One-time weight layout prep (not part of the per-call hot path).
    wh, we, bias, v = prepare_params(attn_w, attn_b, v_w, H)

    out = attention_forward(hidden, encoder_outputs, lengths, wh, we, bias, v)
    out = jax.block_until_ready(out)
    out_np = np.asarray(out)

    ref = np.asarray(reference(hidden, encoder_outputs, lengths, attn_w, attn_b, v_w))

    assert out_np.shape == (B, S)
    # Exact-divide softmax: rows sum to 1 tightly (no approx-reciprocal skew).
    np.testing.assert_allclose(out_np.sum(axis=1), np.ones(B), rtol=1e-5, atol=1e-5)
    # Masked positions (idx >= length) get -1e9 logits -> ~0 probability.
    assert np.all(out_np[0, int(lengths[0]):] < 1e-6)
    # Match the PyTorch-equivalent reference (tolerance covers TPU default matmul precision).
    np.testing.assert_allclose(out_np, ref, rtol=5e-3, atol=5e-3)

    print("KERNEL_OK")
</pallas_src>

<mosaic_0001>
module attributes {stable_mosaic.version = 11 : i64} {
  func.func @_attention_kernel(%arg0: i32, %arg1: memref<1x2x32xf32, #tpu.memory_space<vmem>>, %arg2: memref<16x32xf32, #tpu.memory_space<vmem>>, %arg3: memref<32x64xf32, #tpu.memory_space<vmem>>, %arg4: memref<32x64xf32, #tpu.memory_space<vmem>>, %arg5: memref<1x64xf32, #tpu.memory_space<vmem>>, %arg6: memref<1x64xf32, #tpu.memory_space<vmem>>, %arg7: memref<2x1xi32, #tpu.memory_space<vmem>>, %arg8: memref<2x8xf32, #tpu.memory_space<vmem>>) attributes {dimension_semantics = [#tpu.dimension_semantics<arbitrary>], iteration_bounds = array<i64: 1>, scalar_prefetch = 0 : i64, scratch_operands = 0 : i64, tpu.core_type = #tpu.core_type<tc>, window_params = [{transform_indices = @transform_0, window_bounds = array<i64: 1, 2, 32>}, {pipeline_mode = #tpu.pipeline_mode<synchronous>, transform_indices = @transform_1, window_bounds = array<i64: 16, 32>}, {pipeline_mode = #tpu.pipeline_mode<synchronous>, transform_indices = @transform_2, window_bounds = array<i64: 32, 64>}, {pipeline_mode = #tpu.pipeline_mode<synchronous>, transform_indices = @transform_3, window_bounds = array<i64: 32, 64>}, {pipeline_mode = #tpu.pipeline_mode<synchronous>, transform_indices = @transform_4, window_bounds = array<i64: 1, 64>}, {pipeline_mode = #tpu.pipeline_mode<synchronous>, transform_indices = @transform_5, window_bounds = array<i64: 1, 64>}, {pipeline_mode = #tpu.pipeline_mode<synchronous>, transform_indices = @transform_6, window_bounds = array<i64: 2, 1>}, {pipeline_mode = #tpu.pipeline_mode<synchronous>, transform_indices = @transform_7, window_bounds = array<i64: 2, 8>}]} {
    %c0 = arith.constant 0 : index
    %c0_0 = arith.constant 0 : index
    %c0_1 = arith.constant 0 : index
    %0 = vector.load %arg1[%c0, %c0_0, %c0_1] : memref<1x2x32xf32, #tpu.memory_space<vmem>>, vector<1x2x32xf32>
    %1 = vector.shape_cast %0 : vector<1x2x32xf32> to vector<2x32xf32>
    %c0_2 = arith.constant 0 : index
    %c0_3 = arith.constant 0 : index
    %2 = vector.load %arg3[%c0_2, %c0_3] : memref<32x64xf32, #tpu.memory_space<vmem>>, vector<32x64xf32>
    %cst = arith.constant dense<0.000000e+00> : vector<2x64xf32>
    %3 = tpu.matmul %1, %2, %cst {dimension_numbers = #tpu.dot_dimension_numbers<[1], [0], [0], [1], [0, 0, 1, 1], [], []>} : vector<2x32xf32>, vector<32x64xf32>, vector<2x64xf32> -> vector<2x64xf32>
    %c0_4 = arith.constant 0 : index
    %c0_5 = arith.constant 0 : index
    %4 = vector.load %arg2[%c0_4, %c0_5] : memref<16x32xf32, #tpu.memory_space<vmem>>, vector<16x32xf32>
    %c0_6 = arith.constant 0 : index
    %c0_7 = arith.constant 0 : index
    %5 = vector.load %arg4[%c0_6, %c0_7] : memref<32x64xf32, #tpu.memory_space<vmem>>, vector<32x64xf32>
    %cst_8 = arith.constant dense<0.000000e+00> : vector<16x64xf32>
    %6 = tpu.matmul %4, %5, %cst_8 {dimension_numbers = #tpu.dot_dimension_numbers<[1], [0], [0], [1], [0, 0, 1, 1], [], []>} : vector<16x32xf32>, vector<32x64xf32>, vector<16x64xf32> -> vector<16x64xf32>
    %7 = vector.shape_cast %6 : vector<16x64xf32> to vector<2x8x64xf32>
    %8 = vector.shape_cast %3 : vector<2x64xf32> to vector<2x1x64xf32>
    %9 = vector.broadcast %8 : vector<2x1x64xf32> to vector<2x8x64xf32>
    %10 = arith.addf %7, %9 : vector<2x8x64xf32>
    %c0_9 = arith.constant 0 : index
    %c0_10 = arith.constant 0 : index
    %11 = vector.load %arg5[%c0_9, %c0_10] : memref<1x64xf32, #tpu.memory_space<vmem>>, vector<1x64xf32>
    %12 = vector.shape_cast %11 : vector<1x64xf32> to vector<1x1x64xf32>
    %13 = vector.broadcast %12 : vector<1x1x64xf32> to vector<2x8x64xf32>
    %14 = arith.addf %10, %13 : vector<2x8x64xf32>
    %15 = math.tanh %14 : vector<2x8x64xf32>
    %c0_11 = arith.constant 0 : index
    %c0_12 = arith.constant 0 : index
    %16 = vector.load %arg6[%c0_11, %c0_12] : memref<1x64xf32, #tpu.memory_space<vmem>>, vector<1x64xf32>
    %17 = vector.shape_cast %16 : vector<1x64xf32> to vector<1x1x64xf32>
    %18 = vector.broadcast %17 : vector<1x1x64xf32> to vector<2x8x64xf32>
    %19 = arith.mulf %15, %18 : vector<2x8x64xf32>
    %cst_13 = arith.constant dense<0.000000e+00> : vector<2x8xf32>
    %20 = vector.multi_reduction <add>, %19, %cst_13 [2] : vector<2x8x64xf32> to vector<2x8xf32>
    %21 = tpu.iota {dimensions = array<i32: 1>} : vector<2x8xi32>
    %c0_14 = arith.constant 0 : index
    %c0_15 = arith.constant 0 : index
    %22 = vector.load %arg7[%c0_14, %c0_15] : memref<2x1xi32, #tpu.memory_space<vmem>>, vector<2x1xi32>
    %23 = vector.broadcast %22 : vector<2x1xi32> to vector<2x8xi32>
    %24 = arith.cmpi sge, %21, %23 : vector<2x8xi32>
    %cst_16 = arith.constant -1.000000e+09 : f32
    %25 = vector.broadcast %cst_16 : f32 to vector<2x8xf32>
    %26 = arith.select %24, %25, %20 : vector<2x8xi1>, vector<2x8xf32>
    %cst_17 = arith.constant dense<0xFF800000> : vector<2xf32>
    %27 = vector.multi_reduction <maximumf>, %26, %cst_17 [1] : vector<2x8xf32> to vector<2xf32>
    %28 = vector.shape_cast %27 : vector<2xf32> to vector<2x1xf32>
    %29 = vector.broadcast %28 : vector<2x1xf32> to vector<2x8xf32>
    %30 = arith.subf %26, %29 : vector<2x8xf32>
    %31 = math.exp %30 : vector<2x8xf32>
    %cst_18 = arith.constant dense<0.000000e+00> : vector<2xf32>
    %32 = vector.multi_reduction <add>, %31, %cst_18 [1] : vector<2x8xf32> to vector<2xf32>
    %33 = vector.shape_cast %32 : vector<2xf32> to vector<2x1xf32>
    %34 = vector.broadcast %33 : vector<2x1xf32> to vector<2x8xf32>
    %35 = arith.divf %31, %34 : vector<2x8xf32>
    %c0_19 = arith.constant 0 : index
    %c0_20 = arith.constant 0 : index
    %36 = vector.load %arg8[%c0_19, %c0_20] : memref<2x8xf32, #tpu.memory_space<vmem>>, vector<2x8xf32>
    tpu.vector_store %arg8[%c0_19, %c0_20], %35 {strides = array<i32>} : memref<2x8xf32, #tpu.memory_space<vmem>>, vector<2x8xf32>,
    return
  }
  func.func @transform_0(%arg0: i32) -> (i32, i32, i32) {
    %c1_i32 = arith.constant 1 : i32
    %c0_i32 = arith.constant 0 : i32
    %c0_i32_0 = arith.constant 0 : i32
    %c0_i32_1 = arith.constant 0 : i32
    return %c1_i32, %c0_i32, %c0_i32_0 : i32, i32, i32
  }
  func.func @transform_1(%arg0: i32) -> (i32, i32) {
    %c0_i32 = arith.constant 0 : i32
    %c0_i32_0 = arith.constant 0 : i32
    %c0_i32_1 = arith.constant 0 : i32
    return %c0_i32, %c0_i32_0 : i32, i32
  }
  func.func @transform_2(%arg0: i32) -> (i32, i32) {
    %c0_i32 = arith.constant 0 : i32
    %c0_i32_0 = arith.constant 0 : i32
    %c0_i32_1 = arith.constant 0 : i32
    return %c0_i32, %c0_i32_0 : i32, i32
  }
  func.func @transform_3(%arg0: i32) -> (i32, i32) {
    %c0_i32 = arith.constant 0 : i32
    %c0_i32_0 = arith.constant 0 : i32
    %c0_i32_1 = arith.constant 0 : i32
    return %c0_i32, %c0_i32_0 : i32, i32
  }
  func.func @transform_4(%arg0: i32) -> (i32, i32) {
    %c0_i32 = arith.constant 0 : i32
    %c0_i32_0 = arith.constant 0 : i32
    %c0_i32_1 = arith.constant 0 : i32
    return %c0_i32, %c0_i32_0 : i32, i32
  }
  func.func @transform_5(%arg0: i32) -> (i32, i32) {
    %c0_i32 = arith.constant 0 : i32
    %c0_i32_0 = arith.constant 0 : i32
    %c0_i32_1 = arith.constant 0 : i32
    return %c0_i32, %c0_i32_0 : i32, i32
  }
  func.func @transform_6(%arg0: i32) -> (i32, i32) {
    %c0_i32 = arith.constant 0 : i32
    %c0_i32_0 = arith.constant 0 : i32
    %c0_i32_1 = arith.constant 0 : i32
    return %c0_i32, %c0_i32_0 : i32, i32
  }
  func.func @transform_7(%arg0: i32) -> (i32, i32) {
    %c0_i32 = arith.constant 0 : i32
    %c0_i32_0 = arith.constant 0 : i32
    %c0_i32_1 = arith.constant 0 : i32
    return %c0_i32, %c0_i32_0 : i32, i32
  }
}

</mosaic_0001>

<llo_original>
// kernel: attention_forward.1
$region0: #{attention_forward.1}
  #allocation0 [shape = 'u32[]', space=smem, size = 0x4, offset = 0x4, fixed_abs, tag = 'smem constant byte address 0x4 - core index']
  #allocation1 [shape = 'u32[72,128]{1,0:T(1,128)}', space=vmem, size = 0x9000, scoped, tag = 'internal scratch']
  %s0 = inlined_call_operand.hbm [shape: f32[2,2,32], index: 0, kind: input, shape index: {}]
  %s1 = inlined_call_operand.vmem [shape: f32[16,32], index: 1, kind: input, shape index: {}]
  %s2 = inlined_call_operand.vmem [shape: f32[32,64], index: 2, kind: input, shape index: {}]
  %s3 = inlined_call_operand.hbm [shape: f32[32,64], index: 3, kind: input, shape index: {}]
  %s4 = inlined_call_operand.vmem [shape: f32[1,64], index: 4, kind: input, shape index: {}]
  %s5 = inlined_call_operand.vmem [shape: f32[1,64], index: 5, kind: input, shape index: {}]
  %s6 = inlined_call_operand.vmem [shape: s32[2,1], index: 6, kind: input, shape index: {}]
  %s7 = inlined_call_operand.hbm [shape: f32[2,8], index: 7, kind: output, shape index: {}]
  %s8 = sld [smem:[#allocation0]]
  $region46: #{attention_forward.1} parent=0
    _
  %s10 = ssub.s32 1, %s8
  %s11 = scalar_select 0, %s10, %s8
  $region1: #{attention_forward.1} parent=0
    #allocation2 [shape = 'u8[1024]{0}', space=vmem, size = 0x400, scoped, tag = 'input window, operand 0, single buffered']
    #allocation3 [shape = 's32[1]{0}', space=sflag, size = 0x4, scoped, tag = 'scoped memory for attention_forward.1']
    #allocation4 [shape = 's32[1]{0}', space=sflag, size = 0x4, scoped, tag = 'scoped memory for attention_forward.1']
    #allocation5 [shape = 'u8[16384]{0}', space=vmem, size = 0x4000, scoped, tag = 'input window, operand 3, single buffered']
    #allocation6 [shape = 's32[1]{0}', space=sflag, size = 0x4, scoped, tag = 'scoped memory for attention_forward.1']
    #allocation7 [shape = 'u8[1024]{0}', space=vmem, size = 0x400, scoped, tag = 'output window, operand 0, single buffered']
    %12 = vsyncpa [#allocation3], 0
    %13 = vsyncpa [#allocation6], 0
    %14 = vsyncpa [#allocation4], 0
    // Predicated region
    $region2: #{attention_forward.1} parent=1 // pred_check
      _
    $region3: #{attention_forward.1} parent=1 // pred_check_branch
      %16 = sbr.rel (0) target = $region5
    $region4: #{attention_forward.1} parent=1 // pred_region
      %18 = vsyncadd [#allocation3], 0
      %s19 = scalar_lea.hbm %s0, 2
      %s21 = sshll.u32 %s19, 4
      %s22 = int_to_ptr.hbm [resolvable:$true] %s21
      %s23 = sshll.u32 [#allocation2], 4
      %s24 = int_to_ptr.vmem [resolvable:$true] %s23
      %26 = dma.hbm_to_vmem [thread:$0]  %s22, 32, %s24, [#allocation3]
    $region5: #{attention_forward.1} parent=1 // pred_fallthru
      _
    // Predicated region
    $region6: #{attention_forward.1} parent=1 // pred_check
      _
    $region7: #{attention_forward.1} parent=1 // pred_check_branch
      %28 = sbr.rel (0) target = $region9
    $region8: #{attention_forward.1} parent=1 // pred_region
      _
    $region9: #{attention_forward.1} parent=1 // pred_fallthru
      _
    // Predicated region
    $region10: #{attention_forward.1} parent=1 // pred_check
      _
    $region11: #{attention_forward.1} parent=1 // pred_check_branch
      %30 = sbr.rel (0) target = $region13
    $region12: #{attention_forward.1} parent=1 // pred_region
      _
    $region13: #{attention_forward.1} parent=1 // pred_fallthru
      _
    // Predicated region
    $region14: #{attention_forward.1} parent=1 // pred_check
      _
    $region15: #{attention_forward.1} parent=1 // pred_check_branch
      %32 = sbr.rel (0) target = $region17
    $region16: #{attention_forward.1} parent=1 // pred_region
      %34 = vsyncadd [#allocation6], 0
      %s35 = sshll.u32 %s3, 4
      %s36 = int_to_ptr.hbm [resolvable:$true] %s35
      %s37 = sshll.u32 [#allocation5], 4
      %s38 = int_to_ptr.vmem [resolvable:$true] %s37
      %43 = dma.hbm_to_vmem [thread:$0]  %s36, 512, %s38, [#allocation6], 128, 128, 8
    $region17: #{attention_forward.1} parent=1 // pred_fallthru
      _
    // Predicated region
    $region18: #{attention_forward.1} parent=1 // pred_check
      _
    $region19: #{attention_forward.1} parent=1 // pred_check_branch
      %45 = sbr.rel (0) target = $region21
    $region20: #{attention_forward.1} parent=1 // pred_region
      _
    $region21: #{attention_forward.1} parent=1 // pred_fallthru
      _
    // Predicated region
    $region22: #{attention_forward.1} parent=1 // pred_check
      _
    $region23: #{attention_forward.1} parent=1 // pred_check_branch
      %47 = sbr.rel (0) target = $region25
    $region24: #{attention_forward.1} parent=1 // pred_region
      _
    $region25: #{attention_forward.1} parent=1 // pred_fallthru
      _
    // Predicated region
    $region26: #{attention_forward.1} parent=1 // pred_check
      _
    $region27: #{attention_forward.1} parent=1 // pred_check_branch
      %49 = sbr.rel (0) target = $region29
    $region28: #{attention_forward.1} parent=1 // pred_region
      _
    $region29: #{attention_forward.1} parent=1 // pred_fallthru
      _
    // Predicated region
    $region30: #{attention_forward.1} parent=1 // pred_check
      _
    $region31: #{attention_forward.1} parent=1 // pred_check_branch
      %51 = sbr.rel (0) target = $region33
    $region32: #{attention_forward.1} parent=1 // pred_region
      %53 = dma.done [#allocation3], 32
    $region33: #{attention_forward.1} parent=1 // pred_fallthru
      _
    // Predicated region
    $region34: #{attention_forward.1} parent=1 // pred_check
      _
    $region35: #{attention_forward.1} parent=1 // pred_check_branch
      %55 = sbr.rel (0) target = $region37
    $region36: #{attention_forward.1} parent=1 // pred_region
      %57 = dma.done [#allocation6], 512
    $region37: #{attention_forward.1} parent=1 // pred_fallthru
      _
    %v58 = vld [vmem:[#allocation2] sm:$0x3]
    %v59 = vld [vmem:[%s2] sm:$0xff]
    %v60 = vld [vmem:[%s2 + $0x8] sm:$0xff]
    %v61 = vld [vmem:[%s2 + $0x10] sm:$0xff]
    %v62 = vld [vmem:[%s2 + $0x18] sm:$0xff]
    %vm63 = vcmask 261120
    %v65 = vsel %vm63, %v58, 0
    %67 = vmatpush.msra.mxu0 0.0
    %68 = vmatpush.msra.mxu0 0.0
    %69 = vmatpush.msra.mxu0 0.0
    %70 = vmatpush.msra.mxu0 0.0
    %71 = vmatpush.msra.mxu0 0.0
    %72 = vmatpush.msra.mxu0 0.0
    %73 = vmatpush.msra.mxu0 0.0
    %74 = vmatpush.msra.mxu0 0.0
    %75 = vmatpush.msra.mxu0 0.0
    %76 = vmatpush.msra.mxu0 0.0
    %77 = vmatpush.msra.mxu0 0.0
    %78 = vmatpush.msra.mxu0 0.0
    %79 = vmatpush.msra.mxu0 %v62
    %80 = vmatpush.msra.mxu0 %v61
    %81 = vmatpush.msra.mxu0 %v60
    %82 = vmatpush.msra.mxu0 %v59
    %83 = vmatmul.f32.gmra.mxu0 %v65
    %v84 = vpop.f32.mrf.mxu0
    %v85 = vadd.f32 0.0, %v84
    %86 = vdwg.mxu0
    %v87 = vld [vmem:[%s1] sm:$0xff]
    %v88 = vld [vmem:[%s1 + $0x8] sm:$0xff]
    %v89 = vld [vmem:[#allocation5] sm:$0xff]
    %v90 = vld [vmem:[#allocation5 + $0x8] sm:$0xff]
    %v91 = vld [vmem:[#allocation5 + $0x10] sm:$0xff]
    %v92 = vld [vmem:[#allocation5 + $0x18] sm:$0xff]
    %v94 = vsel %vm63, %v87, 0
    %v97 = vsel %vm63, %v88, 0
    %99 = vmatpush.msra.mxu0 0.0
    %100 = vmatpush.msra.mxu0 0.0
    %101 = vmatpush.msra.mxu0 0.0
    %102 = vmatpush.msra.mxu0 0.0
    %103 = vmatpush.msra.mxu0 0.0
    %104 = vmatpush.msra.mxu0 0.0
    %105 = vmatpush.msra.mxu0 0.0
    %106 = vmatpush.msra.mxu0 0.0
    %107 = vmatpush.msra.mxu0 0.0
    %108 = vmatpush.msra.mxu0 0.0
    %109 = vmatpush.msra.mxu0 0.0
    %110 = vmatpush.msra.mxu0 0.0
    %111 = vmatpush.msra.mxu0 %v92
    %112 = vmatpush.msra.mxu0 %v91
    %113 = vmatpush.msra.mxu0 %v90
    %114 = vmatpush.msra.mxu0 %v89
    %115 = vmatmul.f32.gmra.mxu0 %v94
    %v116 = vpop.f32.mrf.mxu0
    %v117 = vadd.f32 0.0, %v116
    %118 = vmatmul.f32.gmra.mxu0 %v97
    %v119 = vpop.f32.mrf.mxu0
    %v120 = vadd.f32 0.0, %v119
    %121 = vdwg.mxu0
    %v123 = vrot.slane %v85, 1
    %v124 = vperm.slane %v85, 0
    %v125 = vperm.slane %v123, 0
    %v128 = vadd.f32 %v117, %v124
    %v129 = vadd.f32 %v120, %v125
    %v130 = vld [vmem:[%s4] sm:$0x1]
    %v132 = vperm.slane %v130, 0
    %v134 = vadd.f32 %v128, %v132
    %v135 = vadd.f32 %v129, %v132
    %v136 = vtanh.pop %v134
    %v137 = vtanh.pop %v135
    %v138 = vld [vmem:[%s5] sm:$0x1]
    %v140 = vperm.slane %v138, 0
    %v142 = vmul.f32 %v136, %v140
    %v143 = vmul.f32 %v137, %v140
    %vm144 = vcmask 523264
    %v145 = vsel %vm144, %v142, 0.0
    %146 = vadd.xlane.f32.xlu0 %v145
    %v147 = vpop.xlane.xlu0 %146
    %v148 = vsel %vm144, %v143, 0.0
    %149 = vadd.xlane.f32.xlu0 %v148
    %v150 = vpop.xlane.xlu0 %149
    %v151 = vlaneseq
    %v152 = vand.u32 %v151, 127
    %v153 = vld [vmem:[%s6] sm:$0x3]
    %154 = vset.pattern.permute.xlu0 0
    %155 = vperm.xlu0 %154, %v153
    %v156 = vpop.permute.xlu0 %155
    %vm157 = vcmp.ge.s32.totalorder %v152, %v156
    %v160 = vperm.slane %v147, %v152
    %v161 = vperm.slane %v150, %v152
    %vm162 = vcmask 1041409
    %v163 = vsel %vm162, %v161, %v160
    %v165 = vsel %vm157, -1e+09, %v163
    %vm166 = vcmask 58368
    %v167 = vsel %vm166, %v165, -inf
    %168 = vmax.xlane.f32.xlu0 %v167
    %v169 = vpop.xlane.xlu0 %168
    %v170 = vsub.f32 %v165, %v169
    %v171 = vmul.f32 %v170, 1.442695
    %v172 = vpow.pop %v171
    %v173 = vsel %vm166, %v172, 0.0
    %174 = vadd.xlane.f32.xlu0 %v173
    %v175 = vpop.xlane.xlu0 %174
    %v176 = vrcp.pop %v175
    %v177 = vmul.f32 %v175, %v176
    %v178 = vsub.f32 1.0, %v177
    %v179 = vmul.f32 %v176, %v178
    %v180 = vadd.f32 %v176, %v179
    %vm181 = vweird.f32 %v175
    %vm182 = vweird.f32 %v176
    %vm183 = vmor %vm181, %vm182
    %v184 = vsel %vm183, %v176, %v180
    %v185 = vand.u32 2147483647, %v175
    %vm186 = vcmp.eq.f32.partialorder %v185, 8.507059e+37
    %v187 = vand.u32 %v175, 2147483648
    %v188 = vor.u32 1.1754944e-38, %v187
    %v189 = vsel %vm186, %v188, %v184
    %v190 = vmul.f32 %v172, %v189
    %191 = vst.msk [vmem:[#allocation7] sm:$0x3] %vm166, %v190
    // Predicated region
    $region38: #{attention_forward.1} parent=1 // pred_check
      _
    $region39: #{attention_forward.1} parent=1 // pred_check_branch
      %193 = sbr.rel (0) target = $region41
    $region40: #{attention_forward.1} parent=1 // pred_region
      %195 = vsyncadd [#allocation4], 0
      %s197 = sshll.u32 [#allocation7], 4
      %s198 = int_to_ptr.vmem [resolvable:$true] %s197
      %s199 = sshll.u32 %s7, 4
      %s200 = int_to_ptr.hbm [resolvable:$true] %s199
      %202 = dma.vmem_to_hbm [thread:$0]  %s198, 32, %s200, [#allocation4]
    $region41: #{attention_forward.1} parent=1 // pred_fallthru
      _
    // Predicated region
    $region42: #{attention_forward.1} parent=1 // pred_check
      _
    $region43: #{attention_forward.1} parent=1 // pred_check_branch
      %204 = sbr.rel (0) target = $region45
    $region44: #{attention_forward.1} parent=1 // pred_region
      %206 = dma.done [#allocation4], 32
    $region45: #{attention_forward.1} parent=1 // pred_fallthru
      _
    %207 = vsyncpa [#allocation3], 1
    %208 = vsyncpa [#allocation6], 1
    %209 = vsyncpa [#allocation4], 1

</llo_original>
